<compile_context>
chip_gen: v5e
topology: v5e:2x2
jax: 0.10.0
libtpu: 0.0.40
codegen_flags: <defaults>
</compile_context>

<pallas_src>
import math
from functools import partial

import jax
import jax.numpy as jnp
from jax.experimental import pallas as pl
from jax.experimental.pallas import tpu as pltpu


# --------------------------------------------------------------------------
# small helpers
# --------------------------------------------------------------------------
def _round_up(x, m):
    return (x + m - 1) // m * m


def _gelu_tanh(x):
    # tanh-approximation GELU: transcendental goes to the EUP slot instead of
    # a long VALU polynomial.  |err| vs exact erf-GELU <~ 1e-3.
    c = math.sqrt(2.0 / math.pi)
    return 0.5 * x * (1.0 + jnp.tanh(c * (x + 0.044715 * x * x * x)))


def _layernorm(x, g, b, eps=1e-5):
    mu = jnp.mean(x, axis=-1, keepdims=True)
    xc = x - mu
    var = jnp.mean(xc * xc, axis=-1, keepdims=True)
    return xc * jax.lax.rsqrt(var + eps) * g + b


def _pick_batch_tile(B, Np, max_rows=1024):
    """Largest divisor of B whose residual tile stays small enough for VMEM.

    NOTE (v7x): ideally B // Bt stays a multiple of 2 so the two TensorCores get
    equal work; weight-traffic amortization (bigger Bt) usually wins, so we take
    the largest tile.
    """
    bt = 1
    for cand in range(1, B + 1):
        if B % cand == 0 and cand * Np <= max_rows:
            bt = cand
    return bt


def _vmem_limit_bytes(D, Hm, Bt, Np):
    layer_w = 2 * (D * 3 * D + D * D + 2 * D * Hm)            # bf16 weights / layer
    acts = 4 * Bt * Np * (6 * D + 2 * Hm)                     # rough f32 activation bound
    io = 4 * 3 * Bt * Np * D                                  # in / out / residual blocks
    need = 2 * layer_w + acts + io                            # double-buffered weights
    # cap at 64 MiB (v7x physical); v5e/v6e (128 MiB physical) could raise toward ~96 MiB.
    return int(min(64 * 1024 * 1024, max(32 * 1024 * 1024, 2 * need)))


# --------------------------------------------------------------------------
# patch embedding kernel (row-tiled matmul, bf16 operands, f32 accumulate)
# --------------------------------------------------------------------------
def _patch_embed_kernel(x_ref, w_ref, b_ref, o_ref):
    o_ref[...] = (
        jnp.dot(x_ref[...].astype(jnp.bfloat16), w_ref[...],
                preferred_element_type=jnp.float32)
        + b_ref[...]
    ).astype(o_ref.dtype)


def patch_embed_pallas(patches2d, w_pad_bf16, b, *, tile_m=512):
    M, K = patches2d.shape
    Kp, D = w_pad_bf16.shape
    if Kp != K:                                   # lane-dense K (zero numeric cost)
        patches2d = jnp.pad(patches2d, ((0, 0), (0, Kp - K)))
    tm = min(tile_m, _round_up(M, 8))
    Mp = _round_up(M, tm)
    if Mp != M:
        patches2d = jnp.pad(patches2d, ((0, Mp - M), (0, 0)))
    out = pl.pallas_call(
        _patch_embed_kernel,
        grid=(Mp // tm,),
        in_specs=[
            pl.BlockSpec((tm, Kp), lambda i: (i, 0)),
            pl.BlockSpec((Kp, D), lambda i: (0, 0)),
            pl.BlockSpec((1, D), lambda i: (0, 0)),
        ],
        out_specs=pl.BlockSpec((tm, D), lambda i: (i, 0)),
        out_shape=jax.ShapeDtypeStruct((Mp, D), jnp.float32),
        compiler_params=pltpu.CompilerParams(dimension_semantics=("parallel",)),
    )(patches2d, w_pad_bf16, b)
    return out[:M]


# --------------------------------------------------------------------------
# fused multi-layer transformer kernel
#   grid = (B // Bt, depth); batch "parallel" (megacore), depth "arbitrary"
#   residual stream for the Bt-image tile carried across layers in VMEM scratch
# --------------------------------------------------------------------------
def _vit_layers_kernel(
    x_ref,                                   # (Bt, Np, D)   embedded tokens
    ln1g_ref, ln1b_ref,                      # (1, 1, D)
    wqkv_ref, bqkv_ref,                      # (1, D, 3D) bf16, (1, 1, 3D) f32
    wproj_ref, bproj_ref,                    # (1, D, D)  bf16, (1, 1, D)  f32
    ln2g_ref, ln2b_ref,                      # (1, 1, D)
    w1_ref, b1_ref, w2_ref, b2_ref,          # (1, D, Hm), (1,1,Hm), (1, Hm, D), (1,1,D)
    o_ref,                                   # (1, Bt, Np, D)
    xz_ref,                                  # scratch (Bt*Np, D) f32
    *, num_heads, n_real, batch_tile,
):
    layer = pl.program_id(1)
    Bt = batch_tile
    Np = x_ref.shape[1]
    D = x_ref.shape[2]
    M = Bt * Np
    H = num_heads
    hd = D // H

    # CORRECTNESS: residual carry requires depth to be the inner, sequential
    # ("arbitrary") grid axis and this re-init at layer 0.
    @pl.when(layer == 0)
    def _():
        xz_ref[...] = x_ref[...].reshape(M, D)

    x = xz_ref[...]                                          # (M, D) f32

    # ---------------- multi-head self-attention ------------------------------
    xn = _layernorm(x, ln1g_ref[0], ln1b_ref[0]).astype(jnp.bfloat16)
    # fused, lane-dense QKV projection (1/sqrt(hd) already folded into Wq/bq)
    qkv = (jnp.dot(xn, wqkv_ref[0], preferred_element_type=jnp.float32)
           + bqkv_ref[0]).astype(jnp.bfloat16)               # (M, 3D) bf16
    qkv = qkv.reshape(Bt, Np, 3 * D)

    if n_real < Np:   # mask padded key tokens out of the softmax
        key_ids = jax.lax.broadcasted_iota(jnp.int32, (1, 1, Np), 2)
        neg_bias = jnp.where(key_ids < n_real, 0.0, -1e30)
    else:
        neg_bias = None

    ctx_heads = []
    for h in range(H):                                       # heads: static lane slices
        q = qkv[:, :, h * hd:(h + 1) * hd]                   # (Bt, Np, hd) bf16
        k = qkv[:, :, D + h * hd:D + (h + 1) * hd]
        v = qkv[:, :, 2 * D + h * hd:2 * D + (h + 1) * hd]
        s = jax.lax.dot_general(                             # (Bt, Np, Np) f32
            q, k, (((2,), (2,)), ((0,), (0,))),
            preferred_element_type=jnp.float32)
        if neg_bias is not None:
            s = s + neg_bias
        s = s - jnp.max(s, axis=-1, keepdims=True)
        p = jnp.exp(s)
        p = p / jnp.sum(p, axis=-1, keepdims=True)           # exact reciprocal (safer w/ depth)
        ctx_heads.append(
            jax.lax.dot_general(                             # (Bt, Np, hd)
                p.astype(jnp.bfloat16), v, (((2,), (1,)), ((0,), (0,))),
                preferred_element_type=jnp.float32).astype(jnp.bfloat16))
    ctx = jnp.concatenate(ctx_heads, axis=-1).reshape(M, D)  # (M, D) bf16

    attn = jnp.dot(ctx, wproj_ref[0],
                   preferred_element_type=jnp.float32) + bproj_ref[0]
    x = x + attn

    # ---------------- MLP ----------------------------------------------------
    xn2 = _layernorm(x, ln2g_ref[0], ln2b_ref[0]).astype(jnp.bfloat16)
    h1 = jnp.dot(xn2, w1_ref[0], preferred_element_type=jnp.float32) + b1_ref[0]
    h1 = _gelu_tanh(h1).astype(jnp.bfloat16)                 # (M, Hm) bf16
    h2 = jnp.dot(h1, w2_ref[0], preferred_element_type=jnp.float32) + b2_ref[0]
    x = x + h2

    xz_ref[...] = x
    o_ref[0] = x.reshape(Bt, Np, D).astype(o_ref.dtype)


def vit_layers_pallas(xz, stk, *, num_heads, n_real, batch_tile=None):
    B, Np, D = xz.shape
    depth = stk["w_qkv"].shape[0]
    Hm = stk["w_fc1"].shape[-1]

    Bt = batch_tile if batch_tile is not None else _pick_batch_tile(B, Np)
    assert B % Bt == 0

    def wmap(rank):
        return lambda b, l: (l,) + (0,) * (rank - 1)

    out = pl.pallas_call(
        partial(_vit_layers_kernel, num_heads=num_heads, n_real=n_real,
                batch_tile=Bt),
        grid=(B // Bt, depth),
        in_specs=[
            pl.BlockSpec((Bt, Np, D), lambda b, l: (b, 0, 0)),        # embedded tokens
            pl.BlockSpec((1, 1, D), wmap(3)), pl.BlockSpec((1, 1, D), wmap(3)),
            pl.BlockSpec((1, D, 3 * D), wmap(3)), pl.BlockSpec((1, 1, 3 * D), wmap(3)),
            pl.BlockSpec((1, D, D), wmap(3)), pl.BlockSpec((1, 1, D), wmap(3)),
            pl.BlockSpec((1, 1, D), wmap(3)), pl.BlockSpec((1, 1, D), wmap(3)),
            pl.BlockSpec((1, D, Hm), wmap(3)), pl.BlockSpec((1, 1, Hm), wmap(3)),
            pl.BlockSpec((1, Hm, D), wmap(3)), pl.BlockSpec((1, 1, D), wmap(3)),
        ],
        out_specs=pl.BlockSpec((1, Bt, Np, D), lambda b, l: (l, b, 0, 0)),
        out_shape=jax.ShapeDtypeStruct((depth, B, Np, D), jnp.float32),
        scratch_shapes=[pltpu.VMEM((Bt * Np, D), jnp.float32)],
        compiler_params=pltpu.CompilerParams(
            dimension_semantics=("parallel", "arbitrary"),
            vmem_limit_bytes=_vmem_limit_bytes(D, Hm, Bt, Np),
        ),
    )(
        xz,
        stk["ln1_g"], stk["ln1_b"],
        stk["w_qkv"], stk["b_qkv"],
        stk["w_proj"], stk["b_proj"],
        stk["ln2_g"], stk["ln2_b"],
        stk["w_fc1"], stk["b_fc1"], stk["w_fc2"], stk["b_fc2"],
    )
    return out                                              # (depth, B, Np, D)


# --------------------------------------------------------------------------
# wrapper glue: patch extraction, weight stacking, full forward
# --------------------------------------------------------------------------
def extract_patches(x, p):
    # (B, C, H, W) NCHW -> (B, Hp*Wp, C*p*p); same row-major patch order as
    # Conv2d(kernel=stride=p) output reshaped (B, D, HW).permute(0, 2, 1).
    B, C, H, W = x.shape
    Hp, Wp = H // p, W // p
    x = x.reshape(B, C, Hp, p, Wp, p)
    x = x.transpose(0, 2, 4, 1, 3, 5)
    return x.reshape(B, Hp * Wp, C * p * p)


def _stack_block_params(blocks, num_heads):
    """Stack per-layer params along a leading depth axis, fold the softmax
    1/sqrt(hd) into the Q projection, cast matmul weights to bf16
    (wrapper-side layout plumbing, no kernel compute)."""
    D = blocks[0]["w_qkv"].shape[0]
    hd = D // num_heads
    qscale = 1.0 / math.sqrt(hd)

    def stk(name):
        return jnp.stack([blk[name] for blk in blocks])

    scale_row = jnp.concatenate(
        [jnp.full((D,), qscale, jnp.float32), jnp.ones((2 * D,), jnp.float32)])
    w_qkv = stk("w_qkv") * scale_row                         # (L, D, 3D)
    b_qkv = stk("b_qkv") * scale_row                         # (L, 1, 3D)

    return {
        "ln1_g": stk("ln1_g"), "ln1_b": stk("ln1_b"),
        "w_qkv": w_qkv.astype(jnp.bfloat16), "b_qkv": b_qkv,
        "w_proj": stk("w_proj").astype(jnp.bfloat16), "b_proj": stk("b_proj"),
        "ln2_g": stk("ln2_g"), "ln2_b": stk("ln2_b"),
        "w_fc1": stk("w_fc1").astype(jnp.bfloat16), "b_fc1": stk("b_fc1"),
        "w_fc2": stk("w_fc2").astype(jnp.bfloat16), "b_fc2": stk("b_fc2"),
    }


def vit_forward(images_list, params, *, patch_size, num_heads, num_patches_search,
                batch_tile=None):
    B = images_list[0].shape[0]
    D = params["cls_token"].shape[-1]
    pos = params["pos_embed"]

    # lane-dense patch-embed weight (pad K up to a multiple of 128 once)
    K = params["patch_w"].shape[0]
    Kp = _round_up(K, 128)
    patch_w = params["patch_w"].astype(jnp.bfloat16)
    if Kp != K:
        patch_w = jnp.pad(patch_w, ((0, Kp - K), (0, 0)))

    pieces = [jnp.broadcast_to(params["cls_token"], (B, 1, D)) + pos[:, 0:1, :]]
    for i, img in enumerate(images_list):
        patches = extract_patches(img, patch_size)                  # (B, P, K)
        _, P, _ = patches.shape
        emb = patch_embed_pallas(
            patches.reshape(B * P, K), patch_w, params["patch_b"]
        ).reshape(B, P, D)
        if i == 0:
            emb = emb + pos[:, 1:num_patches_search + 1, :]
        else:
            emb = emb + pos[:, num_patches_search + 1:, :]
        pieces.append(emb)
    xz = jnp.concatenate(pieces, axis=1)                            # (B, N, D)

    N = xz.shape[1]
    Np = _round_up(N, 8)                                            # sublane-dense rows
    if Np != N:
        xz = jnp.pad(xz, ((0, 0), (0, Np - N), (0, 0)))

    stacked = _stack_block_params(params["blocks"], num_heads)
    feats = vit_layers_pallas(xz, stacked, num_heads=num_heads, n_real=N,
                              batch_tile=batch_tile)                # (L, B, Np, D)
    depth = len(params["blocks"])
    # per layer: drop cls token (index 0) and padding rows
    return [feats[l, :, 1:N, :] for l in range(depth)]


# --------------------------------------------------------------------------
# deterministic parameter construction
# --------------------------------------------------------------------------
def init_params(key, *, patch_size, embed_dim, depth, num_patches_total, mlp_ratio=4):
    D = embed_dim
    K = 3 * patch_size * patch_size
    Hm = int(mlp_ratio * D)
    keys = jax.random.split(key, 4 + depth)

    def nrm(k, shape, scale=0.02):
        return (scale * jax.random.normal(k, shape)).astype(jnp.float32)

    params = {
        "patch_w": nrm(keys[0], (K, D)),
        "patch_b": nrm(keys[1], (1, D)),
        "cls_token": nrm(keys[2], (1, 1, D)),
        "pos_embed": nrm(keys[3], (1, num_patches_total + 1, D)),
        "blocks": [],
    }
    for i in range(depth):
        bk = jax.random.split(keys[4 + i], 6)
        params["blocks"].append({
            "ln1_g": jnp.ones((1, D), jnp.float32),
            "ln1_b": jnp.zeros((1, D), jnp.float32),
            "w_qkv": nrm(bk[0], (D, 3 * D)),
            "b_qkv": nrm(bk[1], (1, 3 * D)),
            "w_proj": nrm(bk[2], (D, D)),
            "b_proj": nrm(bk[3], (1, D)),
            "ln2_g": jnp.ones((1, D), jnp.float32),
            "ln2_b": jnp.zeros((1, D), jnp.float32),
            "w_fc1": nrm(bk[4], (D, Hm)),
            "b_fc1": jnp.zeros((1, Hm), jnp.float32),
            "w_fc2": nrm(bk[5], (Hm, D)),
            "b_fc2": jnp.zeros((1, D), jnp.float32),
        })
    return params


# --------------------------------------------------------------------------
# pure-JAX reference (exact GELU, highest precision)
# --------------------------------------------------------------------------
def _ref_block(x, blk, num_heads):
    B, N, D = x.shape
    hd = D // num_heads

    def ln(y, g, b):
        mu = y.mean(-1, keepdims=True)
        var = ((y - mu) ** 2).mean(-1, keepdims=True)
        return (y - mu) / jnp.sqrt(var + 1e-5) * g[0] + b[0]

    xn = ln(x, blk["ln1_g"], blk["ln1_b"])
    qkv = jnp.einsum("bnd,de->bne", xn, blk["w_qkv"], precision="highest") + blk["b_qkv"][0]
    q, k, v = jnp.split(qkv, 3, axis=-1)
    q = q.reshape(B, N, num_heads, hd)
    k = k.reshape(B, N, num_heads, hd)
    v = v.reshape(B, N, num_heads, hd)
    s = jnp.einsum("bnhd,bmhd->bhnm", q, k, precision="highest") / math.sqrt(hd)
    p = jax.nn.softmax(s, axis=-1)
    o = jnp.einsum("bhnm,bmhd->bnhd", p, v, precision="highest").reshape(B, N, D)
    o = jnp.einsum("bnd,de->bne", o, blk["w_proj"], precision="highest") + blk["b_proj"][0]
    x = x + o
    xn2 = ln(x, blk["ln2_g"], blk["ln2_b"])
    h = jax.nn.gelu(
        jnp.einsum("bnd,dh->bnh", xn2, blk["w_fc1"], precision="highest") + blk["b_fc1"][0],
        approximate=False,
    )
    return x + jnp.einsum("bnh,hd->bnd", h, blk["w_fc2"], precision="highest") + blk["b_fc2"][0]


def ref_forward(images_list, params, *, patch_size, num_heads, num_patches_search):
    B = images_list[0].shape[0]
    D = params["cls_token"].shape[-1]
    pos = params["pos_embed"]
    xz = jnp.broadcast_to(params["cls_token"], (B, 1, D)) + pos[:, 0:1, :]
    for i, img in enumerate(images_list):
        patches = extract_patches(img, patch_size)
        emb = jnp.einsum("bpk,kd->bpd", patches, params["patch_w"], precision="highest") \
              + params["patch_b"][0]
        if i == 0:
            emb = emb + pos[:, 1:num_patches_search + 1, :]
        else:
            emb = emb + pos[:, num_patches_search + 1:, :]
        xz = jnp.concatenate([xz, emb], axis=1)
    feats = []
    for blk in params["blocks"]:
        xz = _ref_block(xz, blk, num_heads)
        feats.append(xz[:, 1:, :])
    return feats


# --------------------------------------------------------------------------
if __name__ == "__main__":
    # small config consistent with the module's constructor
    search_size, template_size, patch_size = 16, 8, 4
    depth, num_heads, embed_dim = 2, 4, 128     # D=128 -> lane-dense layout
    B = 2

    num_patches_search = (search_size // patch_size) ** 2      # 16
    num_patches_template = (template_size // patch_size) ** 2  # 4
    num_patches_total = num_patches_search + num_patches_template

    key = jax.random.PRNGKey(0)
    k_img_s, k_img_t, k_par = jax.random.split(key, 3)
    x_search = jax.random.normal(k_img_s, (B, 3, search_size, search_size), jnp.float32)
    x_template = jax.random.normal(k_img_t, (B, 3, template_size, template_size), jnp.float32)
    images_list = [x_search, x_template]

    params = init_params(
        k_par, patch_size=patch_size, embed_dim=embed_dim, depth=depth,
        num_patches_total=num_patches_total, mlp_ratio=4,
    )

    feats = vit_forward(
        images_list, params,
        patch_size=patch_size, num_heads=num_heads,
        num_patches_search=num_patches_search,
    )
    feats = [jax.block_until_ready(f) for f in feats]

    # sanity check vs pure-JAX reference (bf16 MXU operands + tanh-GELU vs
    # exact fp32 reference -> loose tolerance)
    refs = ref_forward(
        images_list, params,
        patch_size=patch_size, num_heads=num_heads,
        num_patches_search=num_patches_search,
    )
    for f, r in zip(feats, refs):
        assert f.shape == (B, num_patches_total, embed_dim), f.shape
        assert jnp.allclose(f, r, rtol=3e-2, atol=3e-2), float(jnp.max(jnp.abs(f - r)))

    print("KERNEL_OK")
</pallas_src>

<mosaic_0001>
module attributes {stable_mosaic.version = 11 : i64} {
  func.func @_patch_embed_kernel(%arg0: i32, %arg1: memref<32x128xf32, #tpu.memory_space<vmem>>, %arg2: memref<128x128xbf16, #tpu.memory_space<vmem>>, %arg3: memref<1x128xf32, #tpu.memory_space<vmem>>, %arg4: memref<32x128xf32, #tpu.memory_space<vmem>>) attributes {dimension_semantics = [#tpu.dimension_semantics<parallel>], iteration_bounds = array<i64: 1>, scalar_prefetch = 0 : i64, scratch_operands = 0 : i64, tpu.core_type = #tpu.core_type<tc>, window_params = [{transform_indices = @transform_0, window_bounds = array<i64: 32, 128>}, {pipeline_mode = #tpu.pipeline_mode<synchronous>, transform_indices = @transform_1, window_bounds = array<i64: 128, 128>}, {pipeline_mode = #tpu.pipeline_mode<synchronous>, transform_indices = @transform_2, window_bounds = array<i64: 1, 128>}, {transform_indices = @transform_3, window_bounds = array<i64: 32, 128>}]} {
    %c0 = arith.constant 0 : index
    %c0_0 = arith.constant 0 : index
    %0 = vector.load %arg1[%c0, %c0_0] : memref<32x128xf32, #tpu.memory_space<vmem>>, vector<32x128xf32>
    %1 = arith.truncf %0 : vector<32x128xf32> to vector<32x128xbf16>
    %c0_1 = arith.constant 0 : index
    %c0_2 = arith.constant 0 : index
    %2 = vector.load %arg2[%c0_1, %c0_2] : memref<128x128xbf16, #tpu.memory_space<vmem>>, vector<128x128xbf16>
    %cst = arith.constant dense<0.000000e+00> : vector<32x128xf32>
    %3 = tpu.matmul %1, %2, %cst {dimension_numbers = #tpu.dot_dimension_numbers<[1], [0], [0], [1], [0, 0, 1, 1], [], []>} : vector<32x128xbf16>, vector<128x128xbf16>, vector<32x128xf32> -> vector<32x128xf32>
    %c0_3 = arith.constant 0 : index
    %c0_4 = arith.constant 0 : index
    %4 = vector.load %arg3[%c0_3, %c0_4] : memref<1x128xf32, #tpu.memory_space<vmem>>, vector<1x128xf32>
    %5 = vector.broadcast %4 : vector<1x128xf32> to vector<32x128xf32>
    %6 = arith.addf %3, %5 : vector<32x128xf32>
    %c0_5 = arith.constant 0 : index
    %c0_6 = arith.constant 0 : index
    %7 = vector.load %arg4[%c0_5, %c0_6] : memref<32x128xf32, #tpu.memory_space<vmem>>, vector<32x128xf32>
    tpu.vector_store %arg4[%c0_5, %c0_6], %6 {strides = array<i32>} : memref<32x128xf32, #tpu.memory_space<vmem>>, vector<32x128xf32>,
    return
  }
  func.func @transform_0(%arg0: i32) -> (i32, i32) {
    %c0_i32 = arith.constant 0 : i32
    %c0_i32_0 = arith.constant 0 : i32
    return %arg0, %c0_i32 : i32, i32
  }
  func.func @transform_1(%arg0: i32) -> (i32, i32) {
    %c0_i32 = arith.constant 0 : i32
    %c0_i32_0 = arith.constant 0 : i32
    %c0_i32_1 = arith.constant 0 : i32
    return %c0_i32, %c0_i32_0 : i32, i32
  }
  func.func @transform_2(%arg0: i32) -> (i32, i32) {
    %c0_i32 = arith.constant 0 : i32
    %c0_i32_0 = arith.constant 0 : i32
    %c0_i32_1 = arith.constant 0 : i32
    return %c0_i32, %c0_i32_0 : i32, i32
  }
  func.func @transform_3(%arg0: i32) -> (i32, i32) {
    %c0_i32 = arith.constant 0 : i32
    %c0_i32_0 = arith.constant 0 : i32
    return %arg0, %c0_i32 : i32, i32
  }
}

</mosaic_0001>

<llo_original>
// kernel: tpu_custom_call.1
$region0: #{tpu_custom_call.1}
  #allocation0 [shape = 'u32[]', space=smem, size = 0x4, offset = 0x4, fixed_abs, tag = 'smem constant byte address 0x4 - core index']
  #allocation1 [shape = 'u32[72,128]{1,0:T(1,128)}', space=vmem, size = 0x9000, scoped, tag = 'internal scratch']
  %s0 = inlined_call_operand.hbm [shape: f32[32,128], index: 0, kind: input, shape index: {}]
  %s1 = inlined_call_operand.hbm [shape: bf16[128,128], index: 1, kind: input, shape index: {}]
  %s2 = inlined_call_operand.vmem [shape: f32[1,128], index: 2, kind: input, shape index: {}]
  %s3 = inlined_call_operand.hbm [shape: f32[32,128], index: 3, kind: output, shape index: {}]
  %s4 = sld [smem:[#allocation0]]
  $region30: #{tpu_custom_call.1} parent=0
    _
  %s6 = ssub.s32 1, %s4
  %s7 = scalar_select 0, %s6, %s4
  $region1: #{tpu_custom_call.1} parent=0
    #allocation2 [shape = 'u8[16384]{0}', space=vmem, size = 0x4000, scoped, tag = 'input window, operand 0, single buffered']
    #allocation3 [shape = 's32[1]{0}', space=sflag, size = 0x4, scoped, tag = 'scoped memory for tpu_custom_call.1']
    #allocation4 [shape = 's32[1]{0}', space=sflag, size = 0x4, scoped, tag = 'scoped memory for tpu_custom_call.1']
    #allocation5 [shape = 'u8[32768]{0}', space=vmem, size = 0x8000, scoped, tag = 'input window, operand 1, single buffered']
    #allocation6 [shape = 's32[1]{0}', space=sflag, size = 0x4, scoped, tag = 'scoped memory for tpu_custom_call.1']
    #allocation7 [shape = 'u8[16384]{0}', space=vmem, size = 0x4000, scoped, tag = 'output window, operand 0, single buffered']
    %8 = vsyncpa [#allocation3], 0
    %9 = vsyncpa [#allocation6], 0
    %10 = vsyncpa [#allocation4], 0
    // Predicated region
    $region2: #{tpu_custom_call.1} parent=1 // pred_check
      _
    $region3: #{tpu_custom_call.1} parent=1 // pred_check_branch
      %12 = sbr.rel (0) target = $region5
    $region4: #{tpu_custom_call.1} parent=1 // pred_region
      %14 = vsyncadd [#allocation3], 0
      %s15 = sshll.u32 %s0, 4
      %s16 = int_to_ptr.hbm [resolvable:$true] %s15
      %s17 = sshll.u32 [#allocation2], 4
      %s18 = int_to_ptr.vmem [resolvable:$true] %s17
      %23 = dma.hbm_to_vmem [thread:$0]  %s16, 512, %s18, [#allocation3], 128, 128, 8
    $region5: #{tpu_custom_call.1} parent=1 // pred_fallthru
      _
    // Predicated region
    $region6: #{tpu_custom_call.1} parent=1 // pred_check
      _
    $region7: #{tpu_custom_call.1} parent=1 // pred_check_branch
      %25 = sbr.rel (0) target = $region9
    $region8: #{tpu_custom_call.1} parent=1 // pred_region
      %27 = vsyncadd [#allocation6], 0
      %s28 = sshll.u32 %s1, 4
      %s29 = int_to_ptr.hbm [resolvable:$true] %s28
      %s30 = sshll.u32 [#allocation5], 4
      %s31 = int_to_ptr.vmem [resolvable:$true] %s30
      %36 = dma.hbm_to_vmem [thread:$0]  %s29, 1024, %s31, [#allocation6], 64, 64, 4
    $region9: #{tpu_custom_call.1} parent=1 // pred_fallthru
      _
    // Predicated region
    $region10: #{tpu_custom_call.1} parent=1 // pred_check
      _
    $region11: #{tpu_custom_call.1} parent=1 // pred_check_branch
      %38 = sbr.rel (0) target = $region13
    $region12: #{tpu_custom_call.1} parent=1 // pred_region
      _
    $region13: #{tpu_custom_call.1} parent=1 // pred_fallthru
      _
    // Predicated region
    $region14: #{tpu_custom_call.1} parent=1 // pred_check
      _
    $region15: #{tpu_custom_call.1} parent=1 // pred_check_branch
      %40 = sbr.rel (0) target = $region17
    $region16: #{tpu_custom_call.1} parent=1 // pred_region
      %42 = dma.done [#allocation3], 512
    $region17: #{tpu_custom_call.1} parent=1 // pred_fallthru
      _
    // Predicated region
    $region18: #{tpu_custom_call.1} parent=1 // pred_check
      _
    $region19: #{tpu_custom_call.1} parent=1 // pred_check_branch
      %44 = sbr.rel (0) target = $region21
    $region20: #{tpu_custom_call.1} parent=1 // pred_region
      %46 = dma.done [#allocation6], 1024
    $region21: #{tpu_custom_call.1} parent=1 // pred_fallthru
      _
    %v47 = vld [vmem:[#allocation2] sm:$0xff]
    %v48 = vld [vmem:[#allocation2 + $0x8] sm:$0xff]
    %v49 = vld [vmem:[#allocation2 + $0x10] sm:$0xff]
    %v50 = vld [vmem:[#allocation2 + $0x18] sm:$0xff]
    %v51 = vpack.c.bf16 %v48, %v47
    %v52 = vpack.c.bf16 %v50, %v49
    %v53 = vld [vmem:[#allocation5] sm:$0xf]
    %v54 = vld [vmem:[#allocation5 + $0x4] sm:$0xf]
    %v55 = vld [vmem:[#allocation5 + $0x8] sm:$0xf]
    %v56 = vld [vmem:[#allocation5 + $0xc] sm:$0xf]
    %v57 = vld [vmem:[#allocation5 + $0x10] sm:$0xf]
    %v58 = vld [vmem:[#allocation5 + $0x14] sm:$0xf]
    %v59 = vld [vmem:[#allocation5 + $0x18] sm:$0xf]
    %v60 = vld [vmem:[#allocation5 + $0x1c] sm:$0xf]
    %v61 = vld [vmem:[#allocation5 + $0x20] sm:$0xf]
    %v62 = vld [vmem:[#allocation5 + $0x24] sm:$0xf]
    %v63 = vld [vmem:[#allocation5 + $0x28] sm:$0xf]
    %v64 = vld [vmem:[#allocation5 + $0x2c] sm:$0xf]
    %v65 = vld [vmem:[#allocation5 + $0x30] sm:$0xf]
    %v66 = vld [vmem:[#allocation5 + $0x34] sm:$0xf]
    %v67 = vld [vmem:[#allocation5 + $0x38] sm:$0xf]
    %v68 = vld [vmem:[#allocation5 + $0x3c] sm:$0xf]
    %v69 = vld [vmem:[%s2] sm:$0x1]
    %v71 = vperm.slane %v69, 0
    %v89 = vunpack.c.l.b16 %v53
    %v90 = vunpack.c.l.b16 %v54
    %v91 = vunpack.c.l.b16 %v55
    %v92 = vunpack.c.l.b16 %v56
    %v93 = vunpack.c.l.b16 %v57
    %v94 = vunpack.c.l.b16 %v58
    %v95 = vunpack.c.l.b16 %v59
    %v96 = vunpack.c.l.b16 %v60
    %v97 = vunpack.c.l.b16 %v61
    %v98 = vunpack.c.l.b16 %v62
    %v99 = vunpack.c.l.b16 %v63
    %v100 = vunpack.c.l.b16 %v64
    %v101 = vunpack.c.l.b16 %v65
    %v102 = vunpack.c.l.b16 %v66
    %v103 = vunpack.c.l.b16 %v67
    %v104 = vunpack.c.l.b16 %v68
    %v105 = vpack.c.b16 %v90, %v89
    %v106 = vpack.c.b16 %v92, %v91
    %v107 = vpack.c.b16 %v94, %v93
    %v108 = vpack.c.b16 %v96, %v95
    %v109 = vpack.c.b16 %v98, %v97
    %v110 = vpack.c.b16 %v100, %v99
    %v111 = vpack.c.b16 %v102, %v101
    %v112 = vpack.c.b16 %v104, %v103
    %121 = vmatpush.bf16.msra.mxu0 %v112
    %122 = vmatpush.bf16.msra.mxu0 %v111
    %123 = vmatpush.bf16.msra.mxu0 %v110
    %124 = vmatpush.bf16.msra.mxu0 %v109
    %125 = vmatpush.bf16.msra.mxu0 %v108
    %126 = vmatpush.bf16.msra.mxu0 %v107
    %127 = vmatpush.bf16.msra.mxu0 %v106
    %128 = vmatpush.bf16.msra.mxu0 %v105
    %129 = vmatmul.bf16.gmra.mxu0 %v51
    %v130 = vpop.f32.mrf.mxu0
    %v131 = vadd.f32 %v71, %v130
    %v132 = vpop.f32.mrf.mxu0
    %v133 = vadd.f32 %v71, %v132
    %134 = vmatmul.bf16.gmra.mxu0 %v52
    %v135 = vpop.f32.mrf.mxu0
    %v136 = vadd.f32 %v71, %v135
    %v137 = vpop.f32.mrf.mxu0
    %v138 = vadd.f32 %v71, %v137
    %139 = vdwg.mxu0
    %140 = vst [vmem:[#allocation7] sm:$0xff] %v131
    %141 = vst [vmem:[#allocation7 + $0x8] sm:$0xff] %v133
    %142 = vst [vmem:[#allocation7 + $0x10] sm:$0xff] %v136
    %143 = vst [vmem:[#allocation7 + $0x18] sm:$0xff] %v138
    // Predicated region
    $region22: #{tpu_custom_call.1} parent=1 // pred_check
      _
    $region23: #{tpu_custom_call.1} parent=1 // pred_check_branch
      %145 = sbr.rel (0) target = $region25
    $region24: #{tpu_custom_call.1} parent=1 // pred_region
      %147 = vsyncadd [#allocation4], 0
      %s148 = sshll.u32 [#allocation7], 4
      %s149 = int_to_ptr.vmem [resolvable:$true] %s148
      %s150 = sshll.u32 %s3, 4
      %s151 = int_to_ptr.hbm [resolvable:$true] %s150
      %156 = dma.vmem_to_hbm [thread:$0]  %s149, 512, %s151, [#allocation4], 128, 128, 8
    $region25: #{tpu_custom_call.1} parent=1 // pred_fallthru
      _
    // Predicated region
    $region26: #{tpu_custom_call.1} parent=1 // pred_check
      _
    $region27: #{tpu_custom_call.1} parent=1 // pred_check_branch
      %158 = sbr.rel (0) target = $region29
    $region28: #{tpu_custom_call.1} parent=1 // pred_region
      %160 = dma.done [#allocation4], 512
    $region29: #{tpu_custom_call.1} parent=1 // pred_fallthru
      _
    %161 = vsyncpa [#allocation3], 1
    %162 = vsyncpa [#allocation6], 1
    %163 = vsyncpa [#allocation4], 1

</llo_original>
